<compile_context>
chip_gen: v7x
topology: tpu7x:2x2x1
jax: 0.10.0
libtpu: 0.0.40
codegen_flags: <defaults>
</compile_context>

<pallas_src>
import functools
import math

import jax
import jax.numpy as jnp
from jax.experimental import pallas as pl
from jax.experimental.pallas import tpu as pltpu


# ----------------------------------------------------------------------------
# Helpers
# ----------------------------------------------------------------------------
def _round_up(x, m):
    return ((x + m - 1) // m) * m


# Measured HBM-roofline efficiency vs. tile size (v6e, f32 add benchmark).
_EFF = {128: 0.29, 256: 0.63, 384: 0.75, 512: 0.85}


def _choose_tile(dim, pref):
    """Contraction/lane tile (multiple of 128, <= pref), trading tile-size
    efficiency against padding waste round_up(dim, t)."""
    d128 = _round_up(dim, 128)
    best_t, best_cost = 128, None
    t = 128
    while t <= min(pref, d128):
        eff = _EFF.get(t, 0.86)
        cost = _round_up(d128, t) / eff
        if best_cost is None or cost < best_cost:
            best_t, best_cost = t, cost
        t += 128
    return best_t


def _row_tile(m_pad, pref, want_two_tiles):
    """Row tile: a power-of-two divisor of m_pad (multiple of 8), as large as
    possible but <= pref; optionally split into >=2 tiles so both v7x
    TensorCores get work via the 'parallel' grid axis."""
    cands = []
    d = 1
    while m_pad % d == 0 and (m_pad // d) % 8 == 0:
        cands.append(m_pad // d)
        d *= 2
    fit = [c for c in cands if c <= pref]
    tm = fit[0] if fit else cands[-1]
    if want_two_tiles and tm == m_pad and len(cands) > 1:
        tm = cands[1]
    return tm


def _device_presets():
    """Per-generation tile / VMEM presets."""
    kind = ""
    try:
        kind = jax.devices()[0].device_kind.lower()
    except Exception:  # pragma: no cover - defensive
        pass
    if ("v7" in kind) or ("7x" in kind):
        # v7x: 64 MiB physical VMEM, 2 TensorCores per chip.
        return dict(tm_pref=512, tk_pref=512, vmem_limit=48 * 2**20,
                    pin_budget=12 * 2**20, two_core=True)
    if ("v5" in kind) or ("v6" in kind):
        # v5e / v6e: 128 MiB physical VMEM, 1 TensorCore.
        return dict(tm_pref=1024, tk_pref=1024, vmem_limit=100 * 2**20,
                    pin_budget=24 * 2**20, two_core=False)
    # Unknown device: conservative settings that fit everywhere.
    return dict(tm_pref=512, tk_pref=512, vmem_limit=32 * 2**20,
                pin_budget=8 * 2**20, two_core=False)


def _a_block_spec(tm, tk, buffers):
    """(tm, tk) streamed-A BlockSpec, triple-buffered when requested/possible."""
    index_map = lambda i, kk: (i, kk)
    if buffers > 2 and hasattr(pl, "Buffered"):
        try:
            return pl.BlockSpec((tm, tk), index_map,
                                pipeline_mode=pl.Buffered(buffers))
        except TypeError:
            pass
    return pl.BlockSpec((tm, tk), index_map)


# ----------------------------------------------------------------------------
# Kernels: C = A @ B with a single lane tile over all of B's columns.
#   grid = (rows/tm, K/tk); f32 accumulation in VMEM scratch; A (and B) cast
#   to compute_dtype inside the kernel so f32 HBM operands need no pre-pass.
# ----------------------------------------------------------------------------
def _mm_kernel_pinned_b(a_ref, b_ref, o_ref, acc_ref, *, tk, compute_dtype):
    kk = pl.program_id(1)

    @pl.when(kk == 0)
    def _init():
        acc_ref[...] = jnp.zeros_like(acc_ref)

    start = pl.multiple_of(kk * tk, 128)
    acc_ref[...] += jnp.dot(
        a_ref[...].astype(compute_dtype),
        b_ref[pl.ds(start, tk), :].astype(compute_dtype),
        preferred_element_type=jnp.float32,
    )

    @pl.when(kk == pl.num_programs(1) - 1)
    def _store():
        o_ref[...] = acc_ref[...].astype(o_ref.dtype)


def _mm_kernel_streamed_b(a_ref, b_ref, o_ref, acc_ref, *, compute_dtype):
    kk = pl.program_id(1)

    @pl.when(kk == 0)
    def _init():
        acc_ref[...] = jnp.zeros_like(acc_ref)

    acc_ref[...] += jnp.dot(
        a_ref[...].astype(compute_dtype),
        b_ref[...].astype(compute_dtype),
        preferred_element_type=jnp.float32,
    )

    @pl.when(kk == pl.num_programs(1) - 1)
    def _store():
        o_ref[...] = acc_ref[...].astype(o_ref.dtype)


def _matmul_one_ntile(a, b, *, compute_dtype, out_dtype, tm, tk,
                      vmem_limit, pin_budget, a_buffers=2):
    """C = A @ B, B's full column extent handled by a single lane tile.

    * A is streamed from HBM exactly once as (tm, tk) blocks.
    * B is pinned whole in VMEM (constant index_map -> one DMA) when it fits
      the pin budget, otherwise streamed as (tk, N) k-slabs.
    """
    m, k = a.shape
    k2, n = b.shape
    assert k == k2
    assert m % tm == 0 and k % tk == 0 and n % 128 == 0
    assert tk % 128 == 0 and tm % 8 == 0

    grid = (m // tm, k // tk)
    a_buffers = max(2, min(a_buffers, grid[0] * grid[1]))

    pin_b = (b.size * b.dtype.itemsize) <= pin_budget
    if pin_b:
        b_spec = pl.BlockSpec((k, n), lambda i, kk: (0, 0))   # resident in VMEM
        kernel = functools.partial(_mm_kernel_pinned_b, tk=tk,
                                   compute_dtype=compute_dtype)
    else:
        b_spec = pl.BlockSpec((tk, n), lambda i, kk: (kk, 0))
        kernel = functools.partial(_mm_kernel_streamed_b,
                                   compute_dtype=compute_dtype)

    return pl.pallas_call(
        kernel,
        out_shape=jax.ShapeDtypeStruct((m, n), out_dtype),
        grid_spec=pltpu.PrefetchScalarGridSpec(
            num_scalar_prefetch=0,
            grid=grid,
            in_specs=[_a_block_spec(tm, tk, a_buffers), b_spec],
            out_specs=pl.BlockSpec((tm, n), lambda i, kk: (i, 0)),
            scratch_shapes=[pltpu.VMEM((tm, n), jnp.float32)],
        ),
        compiler_params=pltpu.CompilerParams(
            dimension_semantics=("parallel", "arbitrary"),
            vmem_limit_bytes=vmem_limit,
        ),
    )(a, b)


# ----------------------------------------------------------------------------
# GraphConvolution forward: out = adj @ (x @ W)
# ----------------------------------------------------------------------------
def graph_convolution(x, weight, adj, *, compute_dtype=jnp.bfloat16,
                      presets=None):
    """out = adj @ (x @ weight).

    compute_dtype=bfloat16 (default) uses the native MXU path with f32
    accumulation; results differ slightly from a pure-f32 reference.  Pass
    compute_dtype=jnp.float32 for exact PyTorch-matching numerics.
    """
    n, f_in = x.shape
    f_out = weight.shape[1]
    assert weight.shape[0] == f_in
    assert adj.shape == (n, n)

    p = dict(_device_presets())
    if presets:
        p.update(presets)

    compute_dtype = jnp.dtype(compute_dtype)
    f_out_pad = _round_up(f_out, 128)

    # ---- tiling for the dominant adj @ support matmul ----------------------
    tk = _choose_tile(n, p["tk_pref"])           # adj contraction (lane) tile
    n_pad = _round_up(n, tk)                     # rows & contraction share n
    tm = _row_tile(n_pad, p["tm_pref"], p["two_core"])

    # ---- support = x @ W, computed exactly once ---------------------------
    tk1 = _choose_tile(f_in, 512)
    f_in_pad = _round_up(f_in, tk1)
    tm1 = _row_tile(n_pad, 512, False)

    x_p = x
    if (n_pad, f_in_pad) != (n, f_in):
        x_p = jnp.pad(x, ((0, n_pad - n), (0, f_in_pad - f_in)))
    w_p = weight.astype(compute_dtype)           # tiny: cast + pad eagerly
    if (f_in_pad, f_out_pad) != (f_in, f_out):
        w_p = jnp.pad(w_p, ((0, f_in_pad - f_in), (0, f_out_pad - f_out)))

    support = _matmul_one_ntile(
        x_p, w_p, compute_dtype=compute_dtype, out_dtype=compute_dtype,
        tm=tm1, tk=tk1, vmem_limit=p["vmem_limit"],
        pin_budget=p["pin_budget"], a_buffers=2)

    # ---- out = adj @ support ----------------------------------------------
    # No standalone pad/cast pass over adj unless padding is actually needed;
    # when it is, the pad and the cast to compute_dtype fuse into one pass.
    adj_p = adj
    if n_pad != n:
        adj_p = jnp.pad(adj.astype(compute_dtype),
                        ((0, n_pad - n), (0, n_pad - n)))

    out_p = _matmul_one_ntile(
        adj_p, support, compute_dtype=compute_dtype, out_dtype=jnp.float32,
        tm=tm, tk=tk, vmem_limit=p["vmem_limit"],
        pin_budget=p["pin_budget"], a_buffers=3)

    return out_p[:n, :f_out].astype(x.dtype)


# ----------------------------------------------------------------------------
# Test harness
# ----------------------------------------------------------------------------
def _xavier_uniform(key, shape, dtype=jnp.float32):
    """Matches torch.nn.init.xavier_uniform_ (gain=1)."""
    fan_in, fan_out = shape
    bound = math.sqrt(6.0 / (fan_in + fan_out))
    return jax.random.uniform(key, shape, dtype, minval=-bound, maxval=bound)


def _make_problem(key, n, f_in, f_out):
    k_w, k_x, k_a = jax.random.split(key, 3)
    weight = _xavier_uniform(k_w, (f_in, f_out))
    x = jax.random.normal(k_x, (n, f_in), dtype=jnp.float32)
    a_raw = (jax.random.uniform(k_a, (n, n)) < 0.1).astype(jnp.float32)
    a_sym = jnp.maximum(a_raw, a_raw.T) + jnp.eye(n, dtype=jnp.float32)
    deg = jnp.sum(a_sym, axis=1, keepdims=True)
    adj = a_sym / deg
    return x, weight, adj


if __name__ == "__main__":
    # Case 1: exact f32 compute path, tile-aligned n (no adj pad/cast pre-pass),
    # 128-tiles force multiple row tiles and k-steps (accumulator init/store),
    # pinned-B path, triple-buffered adj stream.
    x1, w1, adj1 = _make_problem(jax.random.PRNGKey(0), n=256, f_in=64, f_out=32)
    out1 = jax.block_until_ready(graph_convolution(
        x1, w1, adj1, compute_dtype=jnp.float32,
        presets=dict(tm_pref=128, tk_pref=128, vmem_limit=32 * 2**20,
                     pin_budget=8 * 2**20, two_core=False)))
    ref1 = adj1 @ (x1 @ w1)
    assert out1.shape == (256, 32)
    assert jnp.allclose(out1, ref1, atol=1e-3, rtol=1e-3), \
        float(jnp.max(jnp.abs(out1 - ref1)))

    # Case 2: default bf16 compute path with device-derived presets; n=320
    # exercises the fused pad+cast path and non-power-of-two tile selection.
    x2, w2, adj2 = _make_problem(jax.random.PRNGKey(1), n=320, f_in=96, f_out=40)
    out2 = jax.block_until_ready(graph_convolution(x2, w2, adj2))
    ref2 = adj2 @ (x2 @ w2)
    assert out2.shape == (320, 40)
    assert jnp.allclose(out2, ref2, atol=8e-2, rtol=5e-2), \
        float(jnp.max(jnp.abs(out2 - ref2)))

    # Case 3: streamed-B fallback (pin_budget=0) with a multi-step reduction
    # and the two-TensorCore row-tile split enabled.
    x3, w3, adj3 = _make_problem(jax.random.PRNGKey(2), n=256, f_in=64, f_out=32)
    out3 = jax.block_until_ready(graph_convolution(
        x3, w3, adj3, compute_dtype=jnp.float32,
        presets=dict(tm_pref=128, tk_pref=128, vmem_limit=32 * 2**20,
                     pin_budget=0, two_core=True)))
    ref3 = adj3 @ (x3 @ w3)
    assert out3.shape == (256, 32)
    assert jnp.allclose(out3, ref3, atol=1e-3, rtol=1e-3), \
        float(jnp.max(jnp.abs(out3 - ref3)))

    print("KERNEL_OK")
</pallas_src>

<mosaic_0001>
module attributes {stable_mosaic.version = 11 : i64} {
  func.func @_mm_kernel_pinned_b(%arg0: i32, %arg1: i32, %arg2: memref<256x128xf32, #tpu.memory_space<vmem>>, %arg3: memref<128x128xf32, #tpu.memory_space<vmem>>, %arg4: memref<256x128xf32, #tpu.memory_space<vmem>>, %arg5: memref<256x128xf32, #tpu.memory_space<vmem>>) attributes {dimension_semantics = [#tpu.dimension_semantics<parallel>, #tpu.dimension_semantics<arbitrary>], iteration_bounds = array<i64: 1, 1>, scalar_prefetch = 0 : i64, scratch_operands = 1 : i64, tpu.core_type = #tpu.core_type<tc>, window_params = [{transform_indices = @transform_0, window_bounds = array<i64: 256, 128>}, {pipeline_mode = #tpu.pipeline_mode<synchronous>, transform_indices = @transform_1, window_bounds = array<i64: 128, 128>}, {transform_indices = @transform_2, window_bounds = array<i64: 256, 128>}]} {
    %c0_i32 = arith.constant 0 : i32
    %0 = arith.cmpi eq, %arg1, %c0_i32 : i32
    %1 = arith.extui %0 : i1 to i32
    %c0_i32_0 = arith.constant 0 : i32
    %2 = arith.cmpi ne, %1, %c0_i32_0 : i32
    scf.if %2 {
      %cst_9 = arith.constant 0.000000e+00 : f32
      %15 = vector.broadcast %cst_9 : f32 to vector<256x128xf32>
      %c0_10 = arith.constant 0 : index
      %c0_11 = arith.constant 0 : index
      %16 = vector.load %arg5[%c0_10, %c0_11] : memref<256x128xf32, #tpu.memory_space<vmem>>, vector<256x128xf32>
      tpu.vector_store %arg5[%c0_10, %c0_11], %15 {strides = array<i32>} : memref<256x128xf32, #tpu.memory_space<vmem>>, vector<256x128xf32>,
    } else {
    }
    %c128_i32 = arith.constant 128 : i32
    %3 = arith.muli %arg1, %c128_i32 : i32
    %4 = tpu.assume_multiple %3, 128 : i32
    %c0 = arith.constant 0 : index
    %c0_1 = arith.constant 0 : index
    %5 = vector.load %arg5[%c0, %c0_1] : memref<256x128xf32, #tpu.memory_space<vmem>>, vector<256x128xf32>
    %c0_2 = arith.constant 0 : index
    %c0_3 = arith.constant 0 : index
    %6 = vector.load %arg2[%c0_2, %c0_3] : memref<256x128xf32, #tpu.memory_space<vmem>>, vector<256x128xf32>
    %7 = arith.index_cast %4 : i32 to index
    %c0_4 = arith.constant 0 : index
    %8 = vector.load %arg3[%7, %c0_4] : memref<128x128xf32, #tpu.memory_space<vmem>>, vector<128x128xf32>
    %cst = arith.constant dense<0.000000e+00> : vector<256x128xf32>
    %9 = tpu.matmul %6, %8, %cst {dimension_numbers = #tpu.dot_dimension_numbers<[1], [0], [0], [1], [0, 0, 1, 1], [], []>} : vector<256x128xf32>, vector<128x128xf32>, vector<256x128xf32> -> vector<256x128xf32>
    %10 = arith.addf %5, %9 : vector<256x128xf32>
    %c0_5 = arith.constant 0 : index
    %c0_6 = arith.constant 0 : index
    %11 = vector.load %arg5[%c0_5, %c0_6] : memref<256x128xf32, #tpu.memory_space<vmem>>, vector<256x128xf32>
    tpu.vector_store %arg5[%c0_5, %c0_6], %10 {strides = array<i32>} : memref<256x128xf32, #tpu.memory_space<vmem>>, vector<256x128xf32>,
    %c0_i32_7 = arith.constant 0 : i32
    %12 = arith.cmpi eq, %arg1, %c0_i32_7 : i32
    %13 = arith.extui %12 : i1 to i32
    %c0_i32_8 = arith.constant 0 : i32
    %14 = arith.cmpi ne, %13, %c0_i32_8 : i32
    scf.if %14 {
      %c0_9 = arith.constant 0 : index
      %c0_10 = arith.constant 0 : index
      %15 = vector.load %arg5[%c0_9, %c0_10] : memref<256x128xf32, #tpu.memory_space<vmem>>, vector<256x128xf32>
      %c0_11 = arith.constant 0 : index
      %c0_12 = arith.constant 0 : index
      %16 = vector.load %arg4[%c0_11, %c0_12] : memref<256x128xf32, #tpu.memory_space<vmem>>, vector<256x128xf32>
      tpu.vector_store %arg4[%c0_11, %c0_12], %15 {strides = array<i32>} : memref<256x128xf32, #tpu.memory_space<vmem>>, vector<256x128xf32>,
    } else {
    }
    return
  }
  func.func @transform_0(%arg0: i32, %arg1: i32) -> (i32, i32) {
    %c0_i32 = arith.constant 0 : i32
    return %arg0, %arg1 : i32, i32
  }
  func.func @transform_1(%arg0: i32, %arg1: i32) -> (i32, i32) {
    %c0_i32 = arith.constant 0 : i32
    %c0_i32_0 = arith.constant 0 : i32
    %c0_i32_1 = arith.constant 0 : i32
    return %c0_i32, %c0_i32_0 : i32, i32
  }
  func.func @transform_2(%arg0: i32, %arg1: i32) -> (i32, i32) {
    %c0_i32 = arith.constant 0 : i32
    %c0_i32_0 = arith.constant 0 : i32
    return %arg0, %c0_i32 : i32, i32
  }
}

</mosaic_0001>

<llo_original>
// kernel: tpu_custom_call.1
$region0: #{tpu_custom_call.1}
  #allocation0 [shape = 'u32[]', space=smem, size = 0x4, offset = 0x4, fixed_abs, tag = 'smem constant byte address 0x4 - core index']
  #allocation1 [shape = 'u32[144,128]{1,0:T(1,128)}', space=vmem, size = 0x12000, scoped, tag = 'internal scratch']
  #allocation2 [shape = 'f32[256,128]{1,0:T(8,128)}', space=vmem, size = 0x20000, scoped, tag = 'scratch operand']
  %s0 = inlined_call_operand.hbm [shape: f32[256,128], index: 0, kind: input, shape index: {}]
  %s1 = inlined_call_operand.hbm [shape: f32[128,128], index: 1, kind: input, shape index: {}]
  %s2 = inlined_call_operand.hbm [shape: f32[256,128], index: 2, kind: output, shape index: {}]
  %s3 = sld [smem:[#allocation0]]
  $region34: #{tpu_custom_call.1} parent=0
    _
  %s5 = ssub.s32 1, %s3
  %s6 = scalar_select 0, %s5, %s3
  $region1: #{tpu_custom_call.1} parent=0
    #allocation3 [shape = 'u8[131072]{0}', space=vmem, size = 0x20000, scoped, tag = 'input window, operand 0, single buffered']
    #allocation4 [shape = 's32[1]{0}', space=sflag, size = 0x4, scoped, tag = 'scoped memory for tpu_custom_call.1']
    #allocation5 [shape = 's32[1]{0}', space=sflag, size = 0x4, scoped, tag = 'scoped memory for tpu_custom_call.1']
    #allocation6 [shape = 'u8[65536]{0}', space=vmem, size = 0x10000, scoped, tag = 'input window, operand 1, single buffered']
    #allocation7 [shape = 's32[1]{0}', space=sflag, size = 0x4, scoped, tag = 'scoped memory for tpu_custom_call.1']
    #allocation8 [shape = 'u8[131072]{0}', space=vmem, size = 0x20000, scoped, tag = 'output window, operand 0, single buffered']
    %7 = vsyncpa [#allocation4], 0
    %8 = vsyncpa [#allocation7], 0
    %9 = vsyncpa [#allocation5], 0
    // Predicated region
    $region2: #{tpu_custom_call.1} parent=1 // pred_check
      _
    $region3: #{tpu_custom_call.1} parent=1 // pred_check_branch
      %11 = sbr.rel (0) target = $region5
    $region4: #{tpu_custom_call.1} parent=1 // pred_region
      %s13 = ssub.s32 4096, 4096
      %14 = vsyncadd [#allocation4], %s13
      %s15 = sshll.u32 [#allocation3], 4
      %s16 = int_to_ptr.vmem [resolvable:$true] %s15
      %21 = dma.hbm_to_vmem [thread:$0]  %s0, 4096, %s16, [#allocation4], 128, 128, 8
    $region5: #{tpu_custom_call.1} parent=1 // pred_fallthru
      _
    // Predicated region
    $region6: #{tpu_custom_call.1} parent=1 // pred_check
      _
    $region7: #{tpu_custom_call.1} parent=1 // pred_check_branch
      %23 = sbr.rel (0) target = $region9
    $region8: #{tpu_custom_call.1} parent=1 // pred_region
      %s25 = ssub.s32 2048, 2048
      %26 = vsyncadd [#allocation7], %s25
      %s27 = sshll.u32 [#allocation6], 4
      %s28 = int_to_ptr.vmem [resolvable:$true] %s27
      %33 = dma.hbm_to_vmem [thread:$0]  %s1, 2048, %s28, [#allocation7], 128, 128, 8
    $region9: #{tpu_custom_call.1} parent=1 // pred_fallthru
      _
    // Predicated region
    $region10: #{tpu_custom_call.1} parent=1 // pred_check
      _
    $region11: #{tpu_custom_call.1} parent=1 // pred_check_branch
      %35 = sbr.rel (0) target = $region13
    $region12: #{tpu_custom_call.1} parent=1 // pred_region
      %36 = dma.done [#allocation4], 4096
    $region13: #{tpu_custom_call.1} parent=1 // pred_fallthru
      _
    // Predicated region
    $region14: #{tpu_custom_call.1} parent=1 // pred_check
      _
    $region15: #{tpu_custom_call.1} parent=1 // pred_check_branch
      %38 = sbr.rel (0) target = $region17
    $region16: #{tpu_custom_call.1} parent=1 // pred_region
      %39 = dma.done [#allocation7], 2048
    $region17: #{tpu_custom_call.1} parent=1 // pred_fallthru
      _
    %p40 = scmp.eq.s32.totalorder 0, 0
    // Predicated region
    $region18: #{tpu_custom_call.1} parent=1 // pred_check
      %p41 = pneg %p40
    $region19: #{tpu_custom_call.1} parent=1 // pred_check_branch
      %43 = sbr.rel (%p41) target = $region21
    $region20: #{tpu_custom_call.1} parent=1 // pred_region
      %44 = vst [vmem:[#allocation2] sm:$0xff] 0.0
      %45 = vst [vmem:[#allocation2 + $0x8] sm:$0xff] 0.0
      %46 = vst [vmem:[#allocation2 + $0x10] sm:$0xff] 0.0
      %47 = vst [vmem:[#allocation2 + $0x18] sm:$0xff] 0.0
      %48 = vst [vmem:[#allocation2 + $0x20] sm:$0xff] 0.0
      %49 = vst [vmem:[#allocation2 + $0x28] sm:$0xff] 0.0
      %50 = vst [vmem:[#allocation2 + $0x30] sm:$0xff] 0.0
      %51 = vst [vmem:[#allocation2 + $0x38] sm:$0xff] 0.0
      %52 = vst [vmem:[#allocation2 + $0x40] sm:$0xff] 0.0
      %53 = vst [vmem:[#allocation2 + $0x48] sm:$0xff] 0.0
      %54 = vst [vmem:[#allocation2 + $0x50] sm:$0xff] 0.0
      %55 = vst [vmem:[#allocation2 + $0x58] sm:$0xff] 0.0
      %56 = vst [vmem:[#allocation2 + $0x60] sm:$0xff] 0.0
      %57 = vst [vmem:[#allocation2 + $0x68] sm:$0xff] 0.0
      %58 = vst [vmem:[#allocation2 + $0x70] sm:$0xff] 0.0
      %59 = vst [vmem:[#allocation2 + $0x78] sm:$0xff] 0.0
      %60 = vst [vmem:[#allocation2 + $0x80] sm:$0xff] 0.0
      %61 = vst [vmem:[#allocation2 + $0x88] sm:$0xff] 0.0
      %62 = vst [vmem:[#allocation2 + $0x90] sm:$0xff] 0.0
      %63 = vst [vmem:[#allocation2 + $0x98] sm:$0xff] 0.0
      %64 = vst [vmem:[#allocation2 + $0xa0] sm:$0xff] 0.0
      %65 = vst [vmem:[#allocation2 + $0xa8] sm:$0xff] 0.0
      %66 = vst [vmem:[#allocation2 + $0xb0] sm:$0xff] 0.0
      %67 = vst [vmem:[#allocation2 + $0xb8] sm:$0xff] 0.0
      %68 = vst [vmem:[#allocation2 + $0xc0] sm:$0xff] 0.0
      %69 = vst [vmem:[#allocation2 + $0xc8] sm:$0xff] 0.0
      %70 = vst [vmem:[#allocation2 + $0xd0] sm:$0xff] 0.0
      %71 = vst [vmem:[#allocation2 + $0xd8] sm:$0xff] 0.0
      %72 = vst [vmem:[#allocation2 + $0xe0] sm:$0xff] 0.0
      %73 = vst [vmem:[#allocation2 + $0xe8] sm:$0xff] 0.0
      %74 = vst [vmem:[#allocation2 + $0xf0] sm:$0xff] 0.0
      %75 = vst [vmem:[#allocation2 + $0xf8] sm:$0xff] 0.0
    $region21: #{tpu_custom_call.1} parent=1 // pred_fallthru
      _
    %s76 = smul.u32 0, 128
    %v77 = vld [vmem:[#allocation2] sm:$0xff]
    %v78 = vld [vmem:[#allocation2 + $0x8] sm:$0xff]
    %v79 = vld [vmem:[#allocation2 + $0x10] sm:$0xff]
    %v80 = vld [vmem:[#allocation2 + $0x18] sm:$0xff]
    %v81 = vld [vmem:[#allocation2 + $0x20] sm:$0xff]
    %v82 = vld [vmem:[#allocation2 + $0x28] sm:$0xff]
    %v83 = vld [vmem:[#allocation2 + $0x30] sm:$0xff]
    %v84 = vld [vmem:[#allocation2 + $0x38] sm:$0xff]
    %v85 = vld [vmem:[#allocation2 + $0x40] sm:$0xff]
    %v86 = vld [vmem:[#allocation2 + $0x48] sm:$0xff]
    %v87 = vld [vmem:[#allocation2 + $0x50] sm:$0xff]
    %v88 = vld [vmem:[#allocation2 + $0x58] sm:$0xff]
    %v89 = vld [vmem:[#allocation2 + $0x60] sm:$0xff]
    %v90 = vld [vmem:[#allocation2 + $0x68] sm:$0xff]
    %v91 = vld [vmem:[#allocation2 + $0x70] sm:$0xff]
    %v92 = vld [vmem:[#allocation2 + $0x78] sm:$0xff]
    %v93 = vld [vmem:[#allocation2 + $0x80] sm:$0xff]
    %v94 = vld [vmem:[#allocation2 + $0x88] sm:$0xff]
    %v95 = vld [vmem:[#allocation2 + $0x90] sm:$0xff]
    %v96 = vld [vmem:[#allocation2 + $0x98] sm:$0xff]
    %v97 = vld [vmem:[#allocation2 + $0xa0] sm:$0xff]
    %v98 = vld [vmem:[#allocation2 + $0xa8] sm:$0xff]
    %v99 = vld [vmem:[#allocation2 + $0xb0] sm:$0xff]
    %v100 = vld [vmem:[#allocation2 + $0xb8] sm:$0xff]
    %v101 = vld [vmem:[#allocation2 + $0xc0] sm:$0xff]
    %v102 = vld [vmem:[#allocation2 + $0xc8] sm:$0xff]
    %v103 = vld [vmem:[#allocation2 + $0xd0] sm:$0xff]
    %v104 = vld [vmem:[#allocation2 + $0xd8] sm:$0xff]
    %v105 = vld [vmem:[#allocation2 + $0xe0] sm:$0xff]
    %v106 = vld [vmem:[#allocation2 + $0xe8] sm:$0xff]
    %v107 = vld [vmem:[#allocation2 + $0xf0] sm:$0xff]
    %v108 = vld [vmem:[#allocation2 + $0xf8] sm:$0xff]
    %v109 = vld [vmem:[#allocation3] sm:$0xff]
    %v110 = vld [vmem:[#allocation3 + $0x8] sm:$0xff]
    %v111 = vld [vmem:[#allocation3 + $0x10] sm:$0xff]
    %v112 = vld [vmem:[#allocation3 + $0x18] sm:$0xff]
    %v113 = vld [vmem:[#allocation3 + $0x20] sm:$0xff]
    %v114 = vld [vmem:[#allocation3 + $0x28] sm:$0xff]
    %v115 = vld [vmem:[#allocation3 + $0x30] sm:$0xff]
    %v116 = vld [vmem:[#allocation3 + $0x38] sm:$0xff]
    %v117 = vld [vmem:[#allocation3 + $0x40] sm:$0xff]
    %v118 = vld [vmem:[#allocation3 + $0x48] sm:$0xff]
    %v119 = vld [vmem:[#allocation3 + $0x50] sm:$0xff]
    %v120 = vld [vmem:[#allocation3 + $0x58] sm:$0xff]
    %v121 = vld [vmem:[#allocation3 + $0x60] sm:$0xff]
    %v122 = vld [vmem:[#allocation3 + $0x68] sm:$0xff]
    %v123 = vld [vmem:[#allocation3 + $0x70] sm:$0xff]
    %v124 = vld [vmem:[#allocation3 + $0x78] sm:$0xff]
    %v125 = vld [vmem:[#allocation3 + $0x80] sm:$0xff]
    %v126 = vld [vmem:[#allocation3 + $0x88] sm:$0xff]
    %v127 = vld [vmem:[#allocation3 + $0x90] sm:$0xff]
    %v128 = vld [vmem:[#allocation3 + $0x98] sm:$0xff]
    %v129 = vld [vmem:[#allocation3 + $0xa0] sm:$0xff]
    %v130 = vld [vmem:[#allocation3 + $0xa8] sm:$0xff]
    %v131 = vld [vmem:[#allocation3 + $0xb0] sm:$0xff]
    %v132 = vld [vmem:[#allocation3 + $0xb8] sm:$0xff]
    %v133 = vld [vmem:[#allocation3 + $0xc0] sm:$0xff]
    %v134 = vld [vmem:[#allocation3 + $0xc8] sm:$0xff]
    %v135 = vld [vmem:[#allocation3 + $0xd0] sm:$0xff]
    %v136 = vld [vmem:[#allocation3 + $0xd8] sm:$0xff]
    %v137 = vld [vmem:[#allocation3 + $0xe0] sm:$0xff]
    %v138 = vld [vmem:[#allocation3 + $0xe8] sm:$0xff]
    %v139 = vld [vmem:[#allocation3 + $0xf0] sm:$0xff]
    %v140 = vld [vmem:[#allocation3 + $0xf8] sm:$0xff]
    %s141 = scalar_lea.vmem [#allocation6], %s76
    %v142 = vld [vmem:[%s141] sm:$0xff]
    %v143 = vld [vmem:[%s141 + $0x8] sm:$0xff]
    %v144 = vld [vmem:[%s141 + $0x10] sm:$0xff]
    %v145 = vld [vmem:[%s141 + $0x18] sm:$0xff]
    %v146 = vld [vmem:[%s141 + $0x20] sm:$0xff]
    %v147 = vld [vmem:[%s141 + $0x28] sm:$0xff]
    %v148 = vld [vmem:[%s141 + $0x30] sm:$0xff]
    %v149 = vld [vmem:[%s141 + $0x38] sm:$0xff]
    %v150 = vld [vmem:[%s141 + $0x40] sm:$0xff]
    %v151 = vld [vmem:[%s141 + $0x48] sm:$0xff]
    %v152 = vld [vmem:[%s141 + $0x50] sm:$0xff]
    %v153 = vld [vmem:[%s141 + $0x58] sm:$0xff]
    %v154 = vld [vmem:[%s141 + $0x60] sm:$0xff]
    %v155 = vld [vmem:[%s141 + $0x68] sm:$0xff]
    %v156 = vld [vmem:[%s141 + $0x70] sm:$0xff]
    %v157 = vld [vmem:[%s141 + $0x78] sm:$0xff]
    %158 = vmatprep.subr.mxu0 0.0
    %159 = vmatpush1.msra.mxu0 %v142
    %160 = vmatprep.subr.mxu0 0.0
    %161 = vmatpush1.msra.mxu0 %v143
    %162 = vmatprep.subr.mxu0 0.0
    %163 = vmatpush1.msra.mxu0 %v144
    %164 = vmatprep.subr.mxu0 0.0
    %165 = vmatpush1.msra.mxu0 %v145
    %166 = vmatprep.subr.mxu0 0.0
    %167 = vmatpush1.msra.mxu0 %v146
    %168 = vmatprep.subr.mxu0 0.0
    %169 = vmatpush1.msra.mxu0 %v147
    %170 = vmatprep.subr.mxu0 0.0
    %171 = vmatpush1.msra.mxu0 %v148
    %172 = vmatprep.subr.mxu0 0.0
    %173 = vmatpush1.msra.mxu0 %v149
    %174 = vmatprep.subr.mxu0 0.0
    %175 = vmatpush1.msra.mxu0 %v150
    %176 = vmatprep.subr.mxu0 0.0
    %177 = vmatpush1.msra.mxu0 %v151
    %178 = vmatprep.subr.mxu0 0.0
    %179 = vmatpush1.msra.mxu0 %v152
    %180 = vmatprep.subr.mxu0 0.0
    %181 = vmatpush1.msra.mxu0 %v153
    %182 = vmatprep.subr.mxu0 0.0
    %183 = vmatpush1.msra.mxu0 %v154
    %184 = vmatprep.subr.mxu0 0.0
    %185 = vmatpush1.msra.mxu0 %v155
    %186 = vmatprep.subr.mxu0 0.0
    %187 = vmatpush1.msra.mxu0 %v156
    %188 = vmatprep.subr.mxu0 0.0
    %189 = vmatpush1.msra.mxu0 %v157
    %190 = vmatprep.subr.mxu0 0.0
    %191 = vmatpush1.msra.mxu0 0.0
    %192 = vmatprep.subr.mxu0 0.0
    %193 = vmatpush1.msra.mxu0 0.0
    %194 = vmatprep.subr.mxu0 0.0
    %195 = vmatpush1.msra.mxu0 0.0
    %196 = vmatprep.subr.mxu0 0.0
    %197 = vmatpush1.msra.mxu0 0.0
    %198 = vmatprep.subr.mxu0 0.0
    %199 = vmatpush1.msra.mxu0 0.0
    %200 = vmatprep.subr.mxu0 0.0
    %201 = vmatpush1.msra.mxu0 0.0
    %202 = vmatprep.subr.mxu0 0.0
    %203 = vmatpush1.msra.mxu0 0.0
    %204 = vmatprep.subr.mxu0 0.0
    %205 = vmatpush1.msra.mxu0 0.0
    %206 = vmatprep.subr.mxu0 0.0
    %207 = vmatpush1.msra.mxu0 0.0
    %208 = vmatprep.subr.mxu0 0.0
    %209 = vmatpush1.msra.mxu0 0.0
    %210 = vmatprep.subr.mxu0 0.0
    %211 = vmatpush1.msra.mxu0 0.0
    %212 = vmatprep.subr.mxu0 0.0
    %213 = vmatpush1.msra.mxu0 0.0
    %214 = vmatprep.subr.mxu0 0.0
    %215 = vmatpush1.msra.mxu0 0.0
    %216 = vmatprep.subr.mxu0 0.0
    %217 = vmatpush1.msra.mxu0 0.0
    %218 = vmatprep.subr.mxu0 0.0
    %219 = vmatpush1.msra.mxu0 0.0
    %220 = vmatprep.subr.mxu0 0.0
    %221 = vmatpush1.msra.mxu0 0.0
    %222 = vmatprep.mubr.f32.mxu0 0.0
    %223 = vmatmul.mubr.f32.gmra.mrb[0].mxu0 %v109
    %v224 = vpop.f32.mrb[0].mxu0
    %v225 = vadd.f32 0.0, %v224
    %v226 = vpop.f32.mrb[0].mxu0
    %227 = vmatprep.mubr.f32.mxu0 0.0
    %228 = vmatmul.mubr.f32.gmra.mrb[0].mxu0 %v110
    %v229 = vpop.f32.mrb[0].mxu0
    %v230 = vadd.f32 0.0, %v229
    %v231 = vpop.f32.mrb[0].mxu0
    %232 = vmatprep.mubr.f32.mxu0 0.0
    %233 = vmatmul.mubr.f32.gmra.mrb[0].mxu0 %v111
    %v234 = vpop.f32.mrb[0].mxu0
    %v235 = vadd.f32 0.0, %v234
    %v236 = vpop.f32.mrb[0].mxu0
    %237 = vmatprep.mubr.f32.mxu0 0.0
    %238 = vmatmul.mubr.f32.gmra.mrb[0].mxu0 %v112
    %v239 = vpop.f32.mrb[0].mxu0
    %v240 = vadd.f32 0.0, %v239
    %v241 = vpop.f32.mrb[0].mxu0
    %242 = vmatprep.mubr.f32.mxu0 0.0
    %243 = vmatmul.mubr.f32.gmra.mrb[0].mxu0 %v113
    %v244 = vpop.f32.mrb[0].mxu0
    %v245 = vadd.f32 0.0, %v244
    %v246 = vpop.f32.mrb[0].mxu0
    %247 = vmatprep.mubr.f32.mxu0 0.0
    %248 = vmatmul.mubr.f32.gmra.mrb[0].mxu0 %v114
    %v249 = vpop.f32.mrb[0].mxu0
    %v250 = vadd.f32 0.0, %v249
    %v251 = vpop.f32.mrb[0].mxu0
    %252 = vmatprep.mubr.f32.mxu0 0.0
    %253 = vmatmul.mubr.f32.gmra.mrb[0].mxu0 %v115
    %v254 = vpop.f32.mrb[0].mxu0
    %v255 = vadd.f32 0.0, %v254
    %v256 = vpop.f32.mrb[0].mxu0
    %257 = vmatprep.mubr.f32.mxu0 0.0
    %258 = vmatmul.mubr.f32.gmra.mrb[0].mxu0 %v116
    %v259 = vpop.f32.mrb[0].mxu0
    %v260 = vadd.f32 0.0, %v259
    %v261 = vpop.f32.mrb[0].mxu0
    %262 = vmatprep.mubr.f32.mxu0 0.0
    %263 = vmatmul.mubr.f32.gmra.mrb[0].mxu0 %v117
    %v264 = vpop.f32.mrb[0].mxu0
    %v265 = vadd.f32 0.0, %v264
    %v266 = vpop.f32.mrb[0].mxu0
    %267 = vmatprep.mubr.f32.mxu0 0.0
    %268 = vmatmul.mubr.f32.gmra.mrb[0].mxu0 %v118
    %v269 = vpop.f32.mrb[0].mxu0
    %v270 = vadd.f32 0.0, %v269
    %v271 = vpop.f32.mrb[0].mxu0
    %272 = vmatprep.mubr.f32.mxu0 0.0
    %273 = vmatmul.mubr.f32.gmra.mrb[0].mxu0 %v119
    %v274 = vpop.f32.mrb[0].mxu0
    %v275 = vadd.f32 0.0, %v274
    %v276 = vpop.f32.mrb[0].mxu0
    %277 = vmatprep.mubr.f32.mxu0 0.0
    %278 = vmatmul.mubr.f32.gmra.mrb[0].mxu0 %v120
    %v279 = vpop.f32.mrb[0].mxu0
    %v280 = vadd.f32 0.0, %v279
    %v281 = vpop.f32.mrb[0].mxu0
    %282 = vmatprep.mubr.f32.mxu0 0.0
    %283 = vmatmul.mubr.f32.gmra.mrb[0].mxu0 %v121
    %v284 = vpop.f32.mrb[0].mxu0
    %v285 = vadd.f32 0.0, %v284
    %v286 = vpop.f32.mrb[0].mxu0
    %287 = vmatprep.mubr.f32.mxu0 0.0
    %288 = vmatmul.mubr.f32.gmra.mrb[0].mxu0 %v122
    %v289 = vpop.f32.mrb[0].mxu0
    %v290 = vadd.f32 0.0, %v289
    %v291 = vpop.f32.mrb[0].mxu0
    %292 = vmatprep.mubr.f32.mxu0 0.0
    %293 = vmatmul.mubr.f32.gmra.mrb[0].mxu0 %v123
    %v294 = vpop.f32.mrb[0].mxu0
    %v295 = vadd.f32 0.0, %v294
    %v296 = vpop.f32.mrb[0].mxu0
    %297 = vmatprep.mubr.f32.mxu0 0.0
    %298 = vmatmul.mubr.f32.gmra.mrb[0].mxu0 %v124
    %v299 = vpop.f32.mrb[0].mxu0
    %v300 = vadd.f32 0.0, %v299
    %v301 = vpop.f32.mrb[0].mxu0
    %302 = vmatprep.mubr.f32.mxu0 0.0
    %303 = vmatmul.mubr.f32.gmra.mrb[0].mxu0 %v125
    %v304 = vpop.f32.mrb[0].mxu0
    %v305 = vadd.f32 0.0, %v304
    %v306 = vpop.f32.mrb[0].mxu0
    %307 = vmatprep.mubr.f32.mxu0 0.0
    %308 = vmatmul.mubr.f32.gmra.mrb[0].mxu0 %v126
    %v309 = vpop.f32.mrb[0].mxu0
    %v310 = vadd.f32 0.0, %v309
    %v311 = vpop.f32.mrb[0].mxu0
    %312 = vmatprep.mubr.f32.mxu0 0.0
    %313 = vmatmul.mubr.f32.gmra.mrb[0].mxu0 %v127
    %v314 = vpop.f32.mrb[0].mxu0
    %v315 = vadd.f32 0.0, %v314
    %v316 = vpop.f32.mrb[0].mxu0
    %317 = vmatprep.mubr.f32.mxu0 0.0
    %318 = vmatmul.mubr.f32.gmra.mrb[0].mxu0 %v128
    %v319 = vpop.f32.mrb[0].mxu0
    %v320 = vadd.f32 0.0, %v319
    %v321 = vpop.f32.mrb[0].mxu0
    %322 = vmatprep.mubr.f32.mxu0 0.0
    %323 = vmatmul.mubr.f32.gmra.mrb[0].mxu0 %v129
    %v324 = vpop.f32.mrb[0].mxu0
    %v325 = vadd.f32 0.0, %v324
    %v326 = vpop.f32.mrb[0].mxu0
    %327 = vmatprep.mubr.f32.mxu0 0.0
    %328 = vmatmul.mubr.f32.gmra.mrb[0].mxu0 %v130
    %v329 = vpop.f32.mrb[0].mxu0
    %v330 = vadd.f32 0.0, %v329
    %v331 = vpop.f32.mrb[0].mxu0
    %332 = vmatprep.mubr.f32.mxu0 0.0
    %333 = vmatmul.mubr.f32.gmra.mrb[0].mxu0 %v131
    %v334 = vpop.f32.mrb[0].mxu0
    %v335 = vadd.f32 0.0, %v334
    %v336 = vpop.f32.mrb[0].mxu0
    %337 = vmatprep.mubr.f32.mxu0 0.0
    %338 = vmatmul.mubr.f32.gmra.mrb[0].mxu0 %v132
    %v339 = vpop.f32.mrb[0].mxu0
    %v340 = vadd.f32 0.0, %v339
    %v341 = vpop.f32.mrb[0].mxu0
    %342 = vmatprep.mubr.f32.mxu0 0.0
    %343 = vmatmul.mubr.f32.gmra.mrb[0].mxu0 %v133
    %v344 = vpop.f32.mrb[0].mxu0
    %v345 = vadd.f32 0.0, %v344
    %v346 = vpop.f32.mrb[0].mxu0
    %347 = vmatprep.mubr.f32.mxu0 0.0
    %348 = vmatmul.mubr.f32.gmra.mrb[0].mxu0 %v134
    %v349 = vpop.f32.mrb[0].mxu0
    %v350 = vadd.f32 0.0, %v349
    %v351 = vpop.f32.mrb[0].mxu0
    %352 = vmatprep.mubr.f32.mxu0 0.0
    %353 = vmatmul.mubr.f32.gmra.mrb[0].mxu0 %v135
    %v354 = vpop.f32.mrb[0].mxu0
    %v355 = vadd.f32 0.0, %v354
    %v356 = vpop.f32.mrb[0].mxu0
    %357 = vmatprep.mubr.f32.mxu0 0.0
    %358 = vmatmul.mubr.f32.gmra.mrb[0].mxu0 %v136
    %v359 = vpop.f32.mrb[0].mxu0
    %v360 = vadd.f32 0.0, %v359
    %v361 = vpop.f32.mrb[0].mxu0
    %362 = vmatprep.mubr.f32.mxu0 0.0
    %363 = vmatmul.mubr.f32.gmra.mrb[0].mxu0 %v137
    %v364 = vpop.f32.mrb[0].mxu0
    %v365 = vadd.f32 0.0, %v364
    %v366 = vpop.f32.mrb[0].mxu0
    %367 = vmatprep.mubr.f32.mxu0 0.0
    %368 = vmatmul.mubr.f32.gmra.mrb[0].mxu0 %v138
    %v369 = vpop.f32.mrb[0].mxu0
    %v370 = vadd.f32 0.0, %v369
    %v371 = vpop.f32.mrb[0].mxu0
    %372 = vmatprep.mubr.f32.mxu0 0.0
    %373 = vmatmul.mubr.f32.gmra.mrb[0].mxu0 %v139
    %v374 = vpop.f32.mrb[0].mxu0
    %v375 = vadd.f32 0.0, %v374
    %v376 = vpop.f32.mrb[0].mxu0
    %377 = vmatprep.mubr.f32.mxu0 0.0
    %378 = vmatmul.mubr.f32.gmra.mrb[0].mxu0 %v140
    %v379 = vpop.f32.mrb[0].mxu0
    %v380 = vadd.f32 0.0, %v379
    %v381 = vpop.f32.mrb[0].mxu0
    %382 = vdwg.mxu0
    %v383 = vadd.f32 %v77, %v225
    %v384 = vadd.f32 %v78, %v230
    %v385 = vadd.f32 %v79, %v235
    %v386 = vadd.f32 %v80, %v240
    %v387 = vadd.f32 %v81, %v245
    %v388 = vadd.f32 %v82, %v250
    %v389 = vadd.f32 %v83, %v255
    %v390 = vadd.f32 %v84, %v260
    %v391 = vadd.f32 %v85, %v265
    %v392 = vadd.f32 %v86, %v270
    %v393 = vadd.f32 %v87, %v275
    %v394 = vadd.f32 %v88, %v280
    %v395 = vadd.f32 %v89, %v285
    %v396 = vadd.f32 %v90, %v290
    %v397 = vadd.f32 %v91, %v295
    %v398 = vadd.f32 %v92, %v300
    %v399 = vadd.f32 %v93, %v305
    %v400 = vadd.f32 %v94, %v310
    %v401 = vadd.f32 %v95, %v315
    %v402 = vadd.f32 %v96, %v320
    %v403 = vadd.f32 %v97, %v325
    %v404 = vadd.f32 %v98, %v330
    %v405 = vadd.f32 %v99, %v335
    %v406 = vadd.f32 %v100, %v340
    %v407 = vadd.f32 %v101, %v345
    %v408 = vadd.f32 %v102, %v350
    %v409 = vadd.f32 %v103, %v355
    %v410 = vadd.f32 %v104, %v360
    %v411 = vadd.f32 %v105, %v365
    %v412 = vadd.f32 %v106, %v370
    %v413 = vadd.f32 %v107, %v375
    %v414 = vadd.f32 %v108, %v380
    %415 = vst [vmem:[#allocation2] sm:$0xff] %v383
    %416 = vst [vmem:[#allocation2 + $0x8] sm:$0xff] %v384
    %417 = vst [vmem:[#allocation2 + $0x10] sm:$0xff] %v385
    %418 = vst [vmem:[#allocation2 + $0x18] sm:$0xff] %v386
    %419 = vst [vmem:[#allocation2 + $0x20] sm:$0xff] %v387
    %420 = vst [vmem:[#allocation2 + $0x28] sm:$0xff] %v388
    %421 = vst [vmem:[#allocation2 + $0x30] sm:$0xff] %v389
    %422 = vst [vmem:[#allocation2 + $0x38] sm:$0xff] %v390
    %423 = vst [vmem:[#allocation2 + $0x40] sm:$0xff] %v391
    %424 = vst [vmem:[#allocation2 + $0x48] sm:$0xff] %v392
    %425 = vst [vmem:[#allocation2 + $0x50] sm:$0xff] %v393
    %426 = vst [vmem:[#allocation2 + $0x58] sm:$0xff] %v394
    %427 = vst [vmem:[#allocation2 + $0x60] sm:$0xff] %v395
    %428 = vst [vmem:[#allocation2 + $0x68] sm:$0xff] %v396
    %429 = vst [vmem:[#allocation2 + $0x70] sm:$0xff] %v397
    %430 = vst [vmem:[#allocation2 + $0x78] sm:$0xff] %v398
    %431 = vst [vmem:[#allocation2 + $0x80] sm:$0xff] %v399
    %432 = vst [vmem:[#allocation2 + $0x88] sm:$0xff] %v400
    %433 = vst [vmem:[#allocation2 + $0x90] sm:$0xff] %v401
    %434 = vst [vmem:[#allocation2 + $0x98] sm:$0xff] %v402
    %435 = vst [vmem:[#allocation2 + $0xa0] sm:$0xff] %v403
    %436 = vst [vmem:[#allocation2 + $0xa8] sm:$0xff] %v404
    %437 = vst [vmem:[#allocation2 + $0xb0] sm:$0xff] %v405
    %438 = vst [vmem:[#allocation2 + $0xb8] sm:$0xff] %v406
    %439 = vst [vmem:[#allocation2 + $0xc0] sm:$0xff] %v407
    %440 = vst [vmem:[#allocation2 + $0xc8] sm:$0xff] %v408
    %441 = vst [vmem:[#allocation2 + $0xd0] sm:$0xff] %v409
    %442 = vst [vmem:[#allocation2 + $0xd8] sm:$0xff] %v410
    %443 = vst [vmem:[#allocation2 + $0xe0] sm:$0xff] %v411
    %444 = vst [vmem:[#allocation2 + $0xe8] sm:$0xff] %v412
    %445 = vst [vmem:[#allocation2 + $0xf0] sm:$0xff] %v413
    %446 = vst [vmem:[#allocation2 + $0xf8] sm:$0xff] %v414
    // Predicated region
    $region22: #{tpu_custom_call.1} parent=1 // pred_check
      %p447 = pneg %p40
    $region23: #{tpu_custom_call.1} parent=1 // pred_check_branch
      %449 = sbr.rel (%p447) target = $region25
    $region24: #{tpu_custom_call.1} parent=1 // pred_region
      %v450 = vld [vmem:[#allocation2] sm:$0xff]
      %v451 = vld [vmem:[#allocation2 + $0x8] sm:$0xff]
      %v452 = vld [vmem:[#allocation2 + $0x10] sm:$0xff]
      %v453 = vld [vmem:[#allocation2 + $0x18] sm:$0xff]
      %v454 = vld [vmem:[#allocation2 + $0x20] sm:$0xff]
      %v455 = vld [vmem:[#allocation2 + $0x28] sm:$0xff]
      %v456 = vld [vmem:[#allocation2 + $0x30] sm:$0xff]
      %v457 = vld [vmem:[#allocation2 + $0x38] sm:$0xff]
      %v458 = vld [vmem:[#allocation2 + $0x40] sm:$0xff]
      %v459 = vld [vmem:[#allocation2 + $0x48] sm:$0xff]
      %v460 = vld [vmem:[#allocation2 + $0x50] sm:$0xff]
      %v461 = vld [vmem:[#allocation2 + $0x58] sm:$0xff]
      %v462 = vld [vmem:[#allocation2 + $0x60] sm:$0xff]
      %v463 = vld [vmem:[#allocation2 + $0x68] sm:$0xff]
      %v464 = vld [vmem:[#allocation2 + $0x70] sm:$0xff]
      %v465 = vld [vmem:[#allocation2 + $0x78] sm:$0xff]
      %v466 = vld [vmem:[#allocation2 + $0x80] sm:$0xff]
      %v467 = vld [vmem:[#allocation2 + $0x88] sm:$0xff]
      %v468 = vld [vmem:[#allocation2 + $0x90] sm:$0xff]
      %v469 = vld [vmem:[#allocation2 + $0x98] sm:$0xff]
      %v470 = vld [vmem:[#allocation2 + $0xa0] sm:$0xff]
      %v471 = vld [vmem:[#allocation2 + $0xa8] sm:$0xff]
      %v472 = vld [vmem:[#allocation2 + $0xb0] sm:$0xff]
      %v473 = vld [vmem:[#allocation2 + $0xb8] sm:$0xff]
      %v474 = vld [vmem:[#allocation2 + $0xc0] sm:$0xff]
      %v475 = vld [vmem:[#allocation2 + $0xc8] sm:$0xff]
      %v476 = vld [vmem:[#allocation2 + $0xd0] sm:$0xff]
      %v477 = vld [vmem:[#allocation2 + $0xd8] sm:$0xff]
      %v478 = vld [vmem:[#allocation2 + $0xe0] sm:$0xff]
      %v479 = vld [vmem:[#allocation2 + $0xe8] sm:$0xff]
      %v480 = vld [vmem:[#allocation2 + $0xf0] sm:$0xff]
      %v481 = vld [vmem:[#allocation2 + $0xf8] sm:$0xff]
      %482 = vst [vmem:[#allocation8] sm:$0xff] %v450
      %483 = vst [vmem:[#allocation8 + $0x8] sm:$0xff] %v451
      %484 = vst [vmem:[#allocation8 + $0x10] sm:$0xff] %v452
      %485 = vst [vmem:[#allocation8 + $0x18] sm:$0xff] %v453
      %486 = vst [vmem:[#allocation8 + $0x20] sm:$0xff] %v454
      %487 = vst [vmem:[#allocation8 + $0x28] sm:$0xff] %v455
      %488 = vst [vmem:[#allocation8 + $0x30] sm:$0xff] %v456
      %489 = vst [vmem:[#allocation8 + $0x38] sm:$0xff] %v457
      %490 = vst [vmem:[#allocation8 + $0x40] sm:$0xff] %v458
      %491 = vst [vmem:[#allocation8 + $0x48] sm:$0xff] %v459
      %492 = vst [vmem:[#allocation8 + $0x50] sm:$0xff] %v460
      %493 = vst [vmem:[#allocation8 + $0x58] sm:$0xff] %v461
      %494 = vst [vmem:[#allocation8 + $0x60] sm:$0xff] %v462
      %495 = vst [vmem:[#allocation8 + $0x68] sm:$0xff] %v463
      %496 = vst [vmem:[#allocation8 + $0x70] sm:$0xff] %v464
      %497 = vst [vmem:[#allocation8 + $0x78] sm:$0xff] %v465
      %498 = vst [vmem:[#allocation8 + $0x80] sm:$0xff] %v466
      %499 = vst [vmem:[#allocation8 + $0x88] sm:$0xff] %v467
      %500 = vst [vmem:[#allocation8 + $0x90] sm:$0xff] %v468
      %501 = vst [vmem:[#allocation8 + $0x98] sm:$0xff] %v469
      %502 = vst [vmem:[#allocation8 + $0xa0] sm:$0xff] %v470
      %503 = vst [vmem:[#allocation8 + $0xa8] sm:$0xff] %v471
      %504 = vst [vmem:[#allocation8 + $0xb0] sm:$0xff] %v472
      %505 = vst [vmem:[#allocation8 + $0xb8] sm:$0xff] %v473
      %506 = vst [vmem:[#allocation8 + $0xc0] sm:$0xff] %v474
      %507 = vst [vmem:[#allocation8 + $0xc8] sm:$0xff] %v475
      %508 = vst [vmem:[#allocation8 + $0xd0] sm:$0xff] %v476
      %509 = vst [vmem:[#allocation8 + $0xd8] sm:$0xff] %v477
      %510 = vst [vmem:[#allocation8 + $0xe0] sm:$0xff] %v478
      %511 = vst [vmem:[#allocation8 + $0xe8] sm:$0xff] %v479
      %512 = vst [vmem:[#allocation8 + $0xf0] sm:$0xff] %v480
      %513 = vst [vmem:[#allocation8 + $0xf8] sm:$0xff] %v481
    $region25: #{tpu_custom_call.1} parent=1 // pred_fallthru
      _
    // Predicated region
    $region26: #{tpu_custom_call.1} parent=1 // pred_check
      _
    $region27: #{tpu_custom_call.1} parent=1 // pred_check_branch
      %515 = sbr.rel (0) target = $region29
    $region28: #{tpu_custom_call.1} parent=1 // pred_region
      %s517 = ssub.s32 4096, 4096
      %518 = vsyncadd [#allocation5], %s517
      %s519 = sshll.u32 [#allocation8], 4
      %s520 = int_to_ptr.vmem [resolvable:$true] %s519
      %525 = dma.vmem_to_hbm [thread:$0]  %s520, 4096, %s2, [#allocation5], 128, 128, 8
    $region29: #{tpu_custom_call.1} parent=1 // pred_fallthru
      _
    // Predicated region
    $region30: #{tpu_custom_call.1} parent=1 // pred_check
      _
    $region31: #{tpu_custom_call.1} parent=1 // pred_check_branch
      %527 = sbr.rel (0) target = $region33
    $region32: #{tpu_custom_call.1} parent=1 // pred_region
      %528 = dma.done [#allocation5], 4096
    $region33: #{tpu_custom_call.1} parent=1 // pred_fallthru
      _
    %529 = vsyncpa [#allocation4], 1
    %530 = vsyncpa [#allocation7], 1
    %531 = vsyncpa [#allocation5], 1

</llo_original>
